<compile_context>
chip_gen: v5e
topology: v5e:2x2
jax: 0.10.0
libtpu: 0.0.40
codegen_flags: <defaults>
</compile_context>

<pallas_src>
import jax
import jax.numpy as jnp
from jax import lax
from jax.experimental import pallas as pl
from jax.experimental.pallas import tpu as pltpu


# ----------------------------------------------------------------------------
# Tiling helpers
# ----------------------------------------------------------------------------

# Rows per grid step. 256 rows x <=32 f32 cols ~ 32 KB/buffer (x2 double-buffer) — far
# below even v7x's 64 MiB VMEM; raise/lower here (or set vmem_limit_bytes) per generation.
_ROW_TILE = 256


def _round_up(n, m):
    return ((n + m - 1) // m) * m


def _tiling(n):
    n8 = _round_up(max(int(n), 1), 8)
    tn = min(_ROW_TILE, n8)
    n_pad = _round_up(n8, tn)
    return n_pad, tn, n_pad // tn


def _pad_rows(x, n_pad):
    n = x.shape[0]
    if n == n_pad:
        return x
    pad = [(0, n_pad - n)] + [(0, 0)] * (x.ndim - 1)
    return jnp.pad(x, pad)


def _prep_rows_i(v, n_pad):
    return _pad_rows(jnp.asarray(v, jnp.int32).reshape(-1, 1), n_pad)


def _prep_rows_f(v, n_pad):
    v = jnp.asarray(v, jnp.float32)
    if v.ndim == 1:
        v = v[:, None]
    return _pad_rows(v, n_pad)


def _valid_mask(n, n_pad):
    return (jnp.arange(n_pad) < n).astype(jnp.float32)[:, None]


def _row_spec(tn, ncol):
    return pl.BlockSpec((tn, ncol), lambda i: (i, 0))


def _full_spec(arr):
    return pl.BlockSpec(arr.shape, lambda i: (0, 0))


# ----------------------------------------------------------------------------
# In-kernel math helpers
# ----------------------------------------------------------------------------

def _bf16_dot(a, b):
    # bf16 operands, f32 accumulation (full-rate MXU on v6e/v7x, harmless on v5e).
    return jnp.dot(a.astype(jnp.bfloat16), b.astype(jnp.bfloat16),
                   preferred_element_type=jnp.float32)


def _sum2d(x):
    # full reduce to a (1, 1) tile (lanes first, then sublanes)
    return jnp.sum(jnp.sum(x, axis=1, keepdims=True), axis=0, keepdims=True)


def _softmax_from_logits(logits):
    m = jnp.max(logits, axis=-1, keepdims=True)
    ez = jnp.exp(logits - m)
    return ez * pl.reciprocal(jnp.sum(ez, axis=-1, keepdims=True), approx=True)


def _posterior_logprob(p0, xt_onehot, at, abar, k):
    # D3PM (uniform transition) posterior q(x_{t-1} | x_t, x0-dist), log domain.
    fact1 = at * xt_onehot + (1.0 - at) / k
    fact2 = abar * p0 + (1.0 - abar) / k
    un = fact1 * fact2
    return jnp.log(un + 1e-30) - jnp.log(jnp.sum(un, axis=-1, keepdims=True))


def _categorical_kl(logp, logq):
    # per-row KL(p || q) = sum_k exp(logp) * (logp - logq)
    return jnp.sum(jnp.exp(logp) * (logp - logq), axis=-1, keepdims=True)


# ----------------------------------------------------------------------------
# Fused Pallas kernels
# ----------------------------------------------------------------------------

def _lig_node_kernel(pert_t_ref, x0_t_ref, tfrac_ref, at_ref, abar_ref, valid_ref,
                     lig_x_ref, x_tgt_ref,
                     w_hf_ref, w_ht_ref, b_h_ref,
                     w_xh_ref, w_xx_ref, b_x_ref,
                     w_ph_ref, b_ph_ref,
                     kl_sum_ref, sq_sum_ref):
    @pl.when(pl.program_id(0) == 0)
    def _():
        kl_sum_ref[...] = jnp.zeros_like(kl_sum_ref)
        sq_sum_ref[...] = jnp.zeros_like(sq_sum_ref)

    k = w_ph_ref.shape[1]
    rows = pert_t_ref.shape[0]
    lanes = lax.broadcasted_iota(jnp.int32, (rows, k), 1)
    xt_oh = (lanes == pert_t_ref[...]).astype(jnp.float32)
    x0_oh = (lanes == x0_t_ref[...]).astype(jnp.float32)
    valid = valid_ref[...]

    # node embedding: one_hot / timestep features built in-kernel, weights pre-split
    # so no HBM feature-concatenate is ever materialized.
    h = (_bf16_dot(xt_oh, w_hf_ref[...])
         + tfrac_ref[...] * w_ht_ref[...]
         + b_h_ref[...])

    # coordinate head (== embded_lig_x == pred_lig_x) and MSE partial sum
    x_pred = (_bf16_dot(h, w_xh_ref[...])
              + _bf16_dot(lig_x_ref[...], w_xx_ref[...])
              + b_x_ref[...])
    d = (x_pred - x_tgt_ref[...]) * valid
    sq_sum_ref[...] += _sum2d(d * d)

    # type head -> softmax -> posteriors -> KL(true_prev || pred_prev)
    logits = _bf16_dot(h, w_ph_ref[...]) + b_ph_ref[...]
    p_pred = _softmax_from_logits(logits)       # = exp(log_softmax(logits))
    at = at_ref[...]
    abar = abar_ref[...]
    kf = jnp.float32(k)
    logq_true = _posterior_logprob(x0_oh + 1e-30, xt_oh, at, abar, kf)
    logq_pred = _posterior_logprob(p_pred, xt_oh, at, abar, kf)
    kl = _categorical_kl(logq_true, logq_pred)
    kl_sum_ref[...] += _sum2d(kl * valid)


def _lig_edge_kernel(pert_t_ref, x0_t_ref, tfrac_ref, at_ref, abar_ref, valid_ref,
                     w_ef_ref, w_et_ref, b_e_ref,
                     w_pe_ref, b_pe_ref,
                     emb_ref, kl_sum_ref):
    @pl.when(pl.program_id(0) == 0)
    def _():
        kl_sum_ref[...] = jnp.zeros_like(kl_sum_ref)

    k = w_pe_ref.shape[1]
    rows = pert_t_ref.shape[0]
    lanes = lax.broadcasted_iota(jnp.int32, (rows, k), 1)
    xt_oh = (lanes == pert_t_ref[...]).astype(jnp.float32)
    x0_oh = (lanes == x0_t_ref[...]).astype(jnp.float32)

    h = (_bf16_dot(xt_oh, w_ef_ref[...])
         + tfrac_ref[...] * w_et_ref[...]
         + b_e_ref[...])
    emb_ref[...] = h                             # needed downstream by the inter-edge head

    logits = _bf16_dot(h, w_pe_ref[...]) + b_pe_ref[...]
    p_pred = _softmax_from_logits(logits)
    at = at_ref[...]
    abar = abar_ref[...]
    kf = jnp.float32(k)
    logq_true = _posterior_logprob(x0_oh + 1e-30, xt_oh, at, abar, kf)
    logq_pred = _posterior_logprob(p_pred, xt_oh, at, abar, kf)
    kl = _categorical_kl(logq_true, logq_pred)
    kl_sum_ref[...] += _sum2d(kl * valid_ref[...])


def _rec_kernel(rec_h_ref, tfrac_ref, gamma_ref, dd_ref, valid_ref,
                w_rf_ref, w_rt_ref, b_r_ref,
                w_pb_ref, b_pb_ref,
                emb_ref, kl_sum_ref):
    @pl.when(pl.program_id(0) == 0)
    def _():
        kl_sum_ref[...] = jnp.zeros_like(kl_sum_ref)

    h = (_bf16_dot(rec_h_ref[...], w_rf_ref[...])
         + tfrac_ref[...] * w_rt_ref[...]
         + b_r_ref[...])
    emb_ref[...] = h                             # needed downstream by the inter-edge head

    logits = _bf16_dot(h, w_pb_ref[...]) + b_pb_ref[...]
    m = jnp.max(logits, axis=-1, keepdims=True)
    z = logits - m
    logq = z - jnp.log(jnp.sum(jnp.exp(z), axis=-1, keepdims=True))

    gamma = gamma_ref[...]
    # TODO(synk): delta-degree is clamped at 0 — the reference torch code NaNs when the
    # perturbation *adds* active inter-edges (negative delta); clamping keeps the KL finite.
    dd = jnp.maximum(dd_ref[...], 0.0)
    log_base = jnp.log(jnp.maximum(1.0 - gamma, 1e-30))
    logp1 = dd * log_base                        # log(1 - p_active), computed directly
    p1 = jnp.exp(logp1)                          # (1 - gamma)^dd
    p_act = 1.0 - p1
    logp0 = jnp.log(p_act + 1e-30)
    p0 = p_act + 1e-30                           # matches torch exp(log(p + 1e-30))

    rows = logits.shape[0]
    lane01 = lax.broadcasted_iota(jnp.int32, (rows, 2), 1)
    logp_true = jnp.where(lane01 == 0, logp0, logp1)
    p_true = jnp.where(lane01 == 0, p0, p1)
    kl = jnp.sum(p_true * (logp_true - logq), axis=-1, keepdims=True)
    kl_sum_ref[...] += _sum2d(kl * valid_ref[...])


def _inter_prev_kernel(x0_t_ref, pert_t_ref, at_ref, abar_ref, prev_lp_ref):
    k = prev_lp_ref.shape[1]
    rows = x0_t_ref.shape[0]
    lanes = lax.broadcasted_iota(jnp.int32, (rows, k), 1)
    x0_oh = (lanes == x0_t_ref[...]).astype(jnp.float32)
    xt_oh = (lanes == pert_t_ref[...]).astype(jnp.float32)
    prev_lp_ref[...] = _posterior_logprob(x0_oh + 1e-30, xt_oh, at_ref[...], abar_ref[...],
                                          jnp.float32(k))


def _inter_kl_kernel(rec_g_ref, lig_g_ref, pert_t_ref, at_ref, abar_ref,
                     prev_lp_ref, w_edge_ref,
                     w_rec_ref, w_lig_ref, b_ref,
                     kl_sum_ref):
    @pl.when(pl.program_id(0) == 0)
    def _():
        kl_sum_ref[...] = jnp.zeros_like(kl_sum_ref)

    k = b_ref.shape[1]
    rows = pert_t_ref.shape[0]
    lanes = lax.broadcasted_iota(jnp.int32, (rows, k), 1)
    xt_oh = (lanes == pert_t_ref[...]).astype(jnp.float32)

    # split-weight head: rec@W_top + lig@W_bot — no [Ni, 2H] concatenate is ever built
    logits = (_bf16_dot(rec_g_ref[...], w_rec_ref[...])
              + _bf16_dot(lig_g_ref[...], w_lig_ref[...])
              + b_ref[...])
    p_pred = _softmax_from_logits(logits)
    logq_pred = _posterior_logprob(p_pred, xt_oh, at_ref[...], abar_ref[...], jnp.float32(k))
    prev_lp = prev_lp_ref[...]
    kl = jnp.sum(jnp.exp(prev_lp) * (prev_lp - logq_pred), axis=-1, keepdims=True)
    kl_sum_ref[...] += _sum2d(kl * w_edge_ref[...])


# ----------------------------------------------------------------------------
# pallas_call wrappers (one launch per entity stream)
# ----------------------------------------------------------------------------

def lig_node_losses(pert_type, x0_type, tfrac, at, abar, lig_x, x_target, p):
    n, dx = lig_x.shape
    n_pad, tn, nb = _tiling(n)
    row_args = (_prep_rows_i(pert_type, n_pad), _prep_rows_i(x0_type, n_pad),
                _prep_rows_f(tfrac, n_pad), _prep_rows_f(at, n_pad),
                _prep_rows_f(abar, n_pad), _valid_mask(n, n_pad),
                _prep_rows_f(lig_x, n_pad), _prep_rows_f(x_target, n_pad))
    w_args = (p['w_f'], p['w_t'], p['b'], p['w_xh'], p['w_xx'], p['b_x'],
              p['w_ph'], p['b_ph'])
    in_specs = ([_row_spec(tn, a.shape[1]) for a in row_args]
                + [_full_spec(w) for w in w_args])
    kl_sum, sq_sum = pl.pallas_call(
        _lig_node_kernel,
        grid=(nb,),
        in_specs=in_specs,
        out_specs=(pl.BlockSpec((1, 1), lambda i: (0, 0)),
                   pl.BlockSpec((1, 1), lambda i: (0, 0))),
        out_shape=(jax.ShapeDtypeStruct((1, 1), jnp.float32),
                   jax.ShapeDtypeStruct((1, 1), jnp.float32)),
        compiler_params=pltpu.CompilerParams(dimension_semantics=("arbitrary",)),
    )(*row_args, *w_args)
    return kl_sum[0, 0] / n, sq_sum[0, 0] / (n * dx)


def lig_edge_losses(pert_type, x0_type, tfrac, at, abar, p):
    n = pert_type.shape[0]
    hidden = p['w_f'].shape[1]
    n_pad, tn, nb = _tiling(n)
    row_args = (_prep_rows_i(pert_type, n_pad), _prep_rows_i(x0_type, n_pad),
                _prep_rows_f(tfrac, n_pad), _prep_rows_f(at, n_pad),
                _prep_rows_f(abar, n_pad), _valid_mask(n, n_pad))
    w_args = (p['w_f'], p['w_t'], p['b'], p['w_pe'], p['b_pe'])
    in_specs = ([_row_spec(tn, a.shape[1]) for a in row_args]
                + [_full_spec(w) for w in w_args])
    emb, kl_sum = pl.pallas_call(
        _lig_edge_kernel,
        grid=(nb,),
        in_specs=in_specs,
        out_specs=(_row_spec(tn, hidden), pl.BlockSpec((1, 1), lambda i: (0, 0))),
        out_shape=(jax.ShapeDtypeStruct((n_pad, hidden), jnp.float32),
                   jax.ShapeDtypeStruct((1, 1), jnp.float32)),
        compiler_params=pltpu.CompilerParams(dimension_semantics=("arbitrary",)),
    )(*row_args, *w_args)
    return emb, kl_sum[0, 0] / n


def rec_losses(rec_h, tfrac, gamma, delta_d, p):
    n = rec_h.shape[0]
    hidden = p['w_f'].shape[1]
    n_pad, tn, nb = _tiling(n)
    row_args = (_prep_rows_f(rec_h, n_pad), _prep_rows_f(tfrac, n_pad),
                _prep_rows_f(gamma, n_pad), _prep_rows_f(delta_d, n_pad),
                _valid_mask(n, n_pad))
    w_args = (p['w_f'], p['w_t'], p['b'], p['w_pb'], p['b_pb'])
    in_specs = ([_row_spec(tn, a.shape[1]) for a in row_args]
                + [_full_spec(w) for w in w_args])
    emb, kl_sum = pl.pallas_call(
        _rec_kernel,
        grid=(nb,),
        in_specs=in_specs,
        out_specs=(_row_spec(tn, hidden), pl.BlockSpec((1, 1), lambda i: (0, 0))),
        out_shape=(jax.ShapeDtypeStruct((n_pad, hidden), jnp.float32),
                   jax.ShapeDtypeStruct((1, 1), jnp.float32)),
        compiler_params=pltpu.CompilerParams(dimension_semantics=("arbitrary",)),
    )(*row_args, *w_args)
    return emb, kl_sum[0, 0] / n


def inter_prev_logprob(x0_type, pert_type, at, abar, k):
    n = x0_type.shape[0]
    n_pad, tn, nb = _tiling(n)
    row_args = (_prep_rows_i(x0_type, n_pad), _prep_rows_i(pert_type, n_pad),
                _prep_rows_f(at, n_pad), _prep_rows_f(abar, n_pad))
    out = pl.pallas_call(
        _inter_prev_kernel,
        grid=(nb,),
        in_specs=[_row_spec(tn, a.shape[1]) for a in row_args],
        out_specs=_row_spec(tn, k),
        out_shape=jax.ShapeDtypeStruct((n_pad, k), jnp.float32),
        compiler_params=pltpu.CompilerParams(dimension_semantics=("parallel",)),
    )(*row_args)
    return out[:n]


def inter_kl_sum(rec_g, lig_g, pert_type, at, abar, prev_logprob, edge_w, p):
    n = pert_type.shape[0]
    n_pad, tn, nb = _tiling(n)
    row_args = (_prep_rows_f(rec_g, n_pad), _prep_rows_f(lig_g, n_pad),
                _prep_rows_i(pert_type, n_pad), _prep_rows_f(at, n_pad),
                _prep_rows_f(abar, n_pad), _prep_rows_f(prev_logprob, n_pad),
                _prep_rows_f(edge_w, n_pad))
    w_args = (p['w_rec'], p['w_lig'], p['b'])
    in_specs = ([_row_spec(tn, a.shape[1]) for a in row_args]
                + [_full_spec(w) for w in w_args])
    kl_sum = pl.pallas_call(
        _inter_kl_kernel,
        grid=(nb,),
        in_specs=in_specs,
        out_specs=pl.BlockSpec((1, 1), lambda i: (0, 0)),
        out_shape=jax.ShapeDtypeStruct((1, 1), jnp.float32),
        compiler_params=pltpu.CompilerParams(dimension_semantics=("arbitrary",)),
    )(*row_args, *w_args)
    return kl_sum[0, 0]


# ----------------------------------------------------------------------------
# Diffusion transitions (deterministic stand-ins; the originals are external)
# ----------------------------------------------------------------------------

class DiscreteTransition:
    """Uniform categorical D3PM-style transition."""

    def __init__(self, num_classes, T=100):
        self.K = num_classes
        self.T = T
        betas = jnp.linspace(1e-2, 2e-1, T, dtype=jnp.float32)
        self.alphas = 1.0 - betas
        self.alpha_bars = jnp.cumprod(self.alphas)

    def sample_xt_from_x0(self, x0, timestep, batch, key):
        abar = self.alpha_bars[timestep][batch][:, None]
        probs = abar * jax.nn.one_hot(x0, self.K, dtype=jnp.float32) + (1.0 - abar) / self.K
        logprobs = jnp.log(probs + 1e-30)
        xt = jax.random.categorical(key, logprobs, axis=-1).astype(jnp.int32)
        return logprobs, xt

    def posterior_coeffs(self, timestep, batch):
        # alpha_t and alpha_bar_{t-1} per row; alpha_bar_{t-1} := 1 at t == 0.
        t_row = timestep[batch]
        at = self.alphas[t_row]
        abar_tm1 = jnp.where(t_row > 0, self.alpha_bars[jnp.maximum(t_row - 1, 0)], 1.0)
        return at, abar_tm1

    def get_gammas(self, timestep, batch):
        return (1.0 - self.alpha_bars)[timestep][batch]


class ContinuousTransition:
    """VP-SDE style Gaussian perturbation."""

    def __init__(self, T=100):
        self.T = T
        betas = jnp.linspace(1e-4, 2e-2, T, dtype=jnp.float32)
        self.alpha_bars = jnp.cumprod(1.0 - betas)

    def xt_from_x0(self, x, timestep, batch, key):
        abar = self.alpha_bars[timestep][batch][:, None]
        eps = jax.random.normal(key, x.shape, dtype=jnp.float32)
        mean = jnp.sqrt(abar) * x
        std = jnp.sqrt(1.0 - abar)
        xt = mean + std * eps
        return mean, std, eps, xt


# ----------------------------------------------------------------------------
# Stand-in model parameters (external GNN in the original).
# ----------------------------------------------------------------------------

class StandInModel:
    # TODO(synk): the real `model.propagate` GNN and prediction heads are external to this
    # module; stood in with linear layers whose matmuls run inside the fused Pallas kernels.
    def __init__(self, key, rec_in_dim, num_lig_h_types, num_lig_e_types,
                 num_inter_e_types, hidden, T):
        ks = jax.random.split(key, 8)

        def lin(k, din, dout):
            w = jax.random.normal(k, (din, dout), jnp.float32) / jnp.sqrt(float(din))
            b = jnp.zeros((1, dout), jnp.float32)
            return w, b

        self.T = float(T)
        self.hidden = hidden
        self.num_lig_h_types = num_lig_h_types
        self.num_lig_e_types = num_lig_e_types

        w_rec, b_rec = lin(ks[0], rec_in_dim + 1, hidden)
        w_ligh, b_ligh = lin(ks[1], num_lig_h_types + 1, hidden)
        w_lige, b_lige = lin(ks[2], num_lig_e_types + 1, hidden)
        w_ligx, b_ligx = lin(ks[3], hidden + 3, 3)
        w_ph, b_ph = lin(ks[4], hidden, num_lig_h_types)
        w_pe, b_pe = lin(ks[5], hidden, num_lig_e_types)
        w_pb, b_pb = lin(ks[6], hidden, 2)
        w_pi, b_pi = lin(ks[7], 2 * hidden, num_inter_e_types)

        # weights pre-split so the fused kernels never materialize a feature concatenate
        self.rec = dict(w_f=w_rec[:rec_in_dim], w_t=w_rec[rec_in_dim:], b=b_rec,
                        w_pb=w_pb, b_pb=b_pb)
        self.lig_h = dict(w_f=w_ligh[:num_lig_h_types], w_t=w_ligh[num_lig_h_types:], b=b_ligh,
                          w_xh=w_ligx[:hidden], w_xx=w_ligx[hidden:], b_x=b_ligx,
                          w_ph=w_ph, b_ph=b_ph)
        self.lig_e = dict(w_f=w_lige[:num_lig_e_types], w_t=w_lige[num_lig_e_types:], b=b_lige,
                          w_pe=w_pe, b_pe=b_pe)
        self.inter = dict(w_rec=w_pi[:hidden], w_lig=w_pi[hidden:], b=b_pi)


# ----------------------------------------------------------------------------
# Graph helpers (scatter/gather glue in plain JAX)
# ----------------------------------------------------------------------------

def compute_degree_for_inter_edge(inter_e_index, inter_e_type, num_rec_nodes):
    exist = (inter_e_type != 0).astype(jnp.float32)
    deg = jax.ops.segment_sum(exist, inter_e_index[0], num_segments=num_rec_nodes)
    return deg, None


def compute_active_node_for_inter_edge(inter_e_index, prev_type, pert_type, num_rec_nodes):
    changed = (prev_type != pert_type).astype(jnp.int32)
    node_changed = jax.ops.segment_max(changed, inter_e_index[0], num_segments=num_rec_nodes)
    mask = node_changed > 0
    return mask, None, None


# ----------------------------------------------------------------------------
# InterEDGEDirectLoss (JAX / Pallas)
# ----------------------------------------------------------------------------

class InterEDGEDirectLoss:
    def __init__(self, confs, model, transitions):
        self.confs = confs
        self.model = model
        self.lig_h_transition = transitions[0]
        self.lig_x_transition = transitions[1]
        self.lig_e_transition = transitions[2]
        self.inter_e_transition = transitions[3]

    def forward(self, rec_graph, lig_graph, inter_e_index, inter_e_type, timestep, key,
                is_train=None):
        kh, kx, ke, ki, ksample = jax.random.split(key, 5)
        model = self.model
        T = model.T

        rec_h_batch = rec_graph['batch']
        lig_h_batch = lig_graph['batch']
        lig_e_batch = lig_graph['batch'][lig_graph['e_index'][0]]
        inter_e_batch = lig_graph['batch'][inter_e_index[1]]

        # ---- forward diffusion (random sampling stays in plain JAX) ----
        _, pert_lig_h_type = self.lig_h_transition.sample_xt_from_x0(
            lig_graph['h_type'], timestep, lig_h_batch, kh)
        _, _, epsilon_lig_x, pert_lig_x = self.lig_x_transition.xt_from_x0(
            lig_graph['x'], timestep, lig_h_batch, kx)
        _, pert_lig_e_type = self.lig_e_transition.sample_xt_from_x0(
            lig_graph['e_type'], timestep, lig_e_batch, ke)
        if not self.confs['abl_igen']:
            _, pert_inter_e_type = self.inter_e_transition.sample_xt_from_x0(
                inter_e_type, timestep, inter_e_batch, ki)
        else:
            inter_e_index = None
            pert_inter_e_type = None

        # per-row timestep features and posterior schedule coefficients (XLA gather glue)
        t_lig = timestep[lig_h_batch].astype(jnp.float32) / T
        t_lige = timestep[lig_e_batch].astype(jnp.float32) / T
        t_rec = timestep[rec_h_batch].astype(jnp.float32) / T
        at_h, abar_h = self.lig_h_transition.posterior_coeffs(timestep, lig_h_batch)
        at_e, abar_e = self.lig_e_transition.posterior_coeffs(timestep, lig_e_batch)
        at_i, abar_i = self.inter_e_transition.posterior_coeffs(timestep, inter_e_batch)

        # ---- lig node: fused embed -> coord head (MSE) -> type head -> posterior KL ----
        # TODO(synk): the t==0 decoder-NLL branch of the external transition's calc_loss is
        # omitted (KL term only); alpha_bar_{t-1} is forced to 1 at t==0.
        if self.confs['mse_train_objective'] == 'noise':
            x_target = jax.lax.stop_gradient(epsilon_lig_x)
        elif self.confs['mse_train_objective'] == 'data':
            x_target = jax.lax.stop_gradient(lig_graph['x'])
        else:
            raise NotImplementedError
        lig_h_loss, lig_x_loss = lig_node_losses(
            pert_lig_h_type, lig_graph['h_type'], t_lig, at_h, abar_h,
            pert_lig_x, x_target, model.lig_h)

        # ---- lig edge: fused embed -> type head -> posterior KL (+ edge embedding out) ----
        embded_lig_e, lig_e_loss = lig_edge_losses(
            pert_lig_e_type, lig_graph['e_type'], t_lige, at_e, abar_e, model.lig_e)

        # ---- active-receptor-node loss: fused embed -> binary head -> KL ----
        num_rec = rec_h_batch.shape[0]
        rec_d, _ = compute_degree_for_inter_edge(inter_e_index, inter_e_type, num_rec)
        pert_rec_d, _ = compute_degree_for_inter_edge(inter_e_index, pert_inter_e_type, num_rec)
        delta_rec_d = rec_d - pert_rec_d
        inter_e_gamma = self.inter_e_transition.get_gammas(timestep, rec_h_batch)
        embded_rec_h, active_rec_h_for_inter_e_loss = rec_losses(
            rec_graph['h'], t_rec, inter_e_gamma, delta_rec_d, model.rec)

        # ---- inter edge loss ----
        prev_inter_e_logprob = inter_prev_logprob(
            inter_e_type, pert_inter_e_type, at_i, abar_i, self.inter_e_transition.K)
        prev_inter_e_type = jax.random.categorical(
            ksample, prev_inter_e_logprob, axis=-1).astype(jnp.int32)
        active_mask, _, _ = compute_active_node_for_inter_edge(
            inter_e_index, prev_inter_e_type, pert_inter_e_type, num_rec)
        # TODO(synk): bipartite_subgraph with a data-dependent edge count is replaced by a
        # static-shape edge mask (identical loss for a per-edge-independent predictor).
        sub_inter_e_mask = active_mask[inter_e_index[0]].astype(jnp.float32)
        # TODO(synk): edge-endpoint gather stays in XLA; a scalar-prefetch index_map gather
        # inside the kernel would remove this HBM round-trip at production edge counts.
        rec_g = embded_rec_h[inter_e_index[0]]
        lig_g = embded_lig_e[inter_e_index[1]]
        kl_wsum = inter_kl_sum(rec_g, lig_g, pert_inter_e_type, at_i, abar_i,
                               prev_inter_e_logprob, sub_inter_e_mask, model.inter)
        msum = jnp.sum(sub_inter_e_mask)
        inter_e_loss = jnp.where(msum > 0, kl_wsum / jnp.maximum(msum, 1.0), jnp.float32(0.0))

        loss = (lig_h_loss * self.confs['lig_h_loss']
                + lig_x_loss * self.confs['lig_x_loss']
                + lig_e_loss * self.confs['lig_e_loss']
                + inter_e_loss * self.confs['inter_e_loss']
                + active_rec_h_for_inter_e_loss * self.confs['active_rec_h_for_inter_e_loss'])
        return (loss, lig_h_loss, lig_x_loss, lig_e_loss, inter_e_loss,
                active_rec_h_for_inter_e_loss)


# ----------------------------------------------------------------------------
# Demo
# ----------------------------------------------------------------------------

if __name__ == "__main__":
    key = jax.random.PRNGKey(0)
    k_model, k_rec, k_recx, k_ligx, k_run = jax.random.split(key, 5)

    B = 2       # graphs in batch
    Nr = 16     # receptor nodes
    Dr = 8      # receptor node feature dim
    Nl = 8      # ligand nodes
    Kh = 8      # ligand atom types
    Ke = 4      # ligand bond types
    Ki = 2      # inter-edge types (0 = none, 1 = contact)
    H = 32      # hidden size
    T = 100     # diffusion steps

    rec_batch = jnp.repeat(jnp.arange(B, dtype=jnp.int32), Nr // B)
    lig_batch = jnp.repeat(jnp.arange(B, dtype=jnp.int32), Nl // B)

    rec_graph = dict(
        h=jax.random.normal(k_rec, (Nr, Dr), jnp.float32),
        x=jax.random.normal(k_recx, (Nr, 3), jnp.float32),
        e_index=jnp.stack([jnp.arange(Nr, dtype=jnp.int32),
                           (jnp.arange(Nr, dtype=jnp.int32) + 1) % Nr]),
        e_type=jnp.zeros((Nr,), jnp.int32),
        batch=rec_batch,
    )

    # per-graph directed rings (both directions) => 16 ligand edges total
    half = Nl // B
    srcs, dsts = [], []
    for g in range(B):
        s = g * half + jnp.arange(half, dtype=jnp.int32)
        d = g * half + (jnp.arange(half, dtype=jnp.int32) + 1) % half
        srcs += [s, d]
        dsts += [d, s]
    lig_e_index = jnp.stack([jnp.concatenate(srcs), jnp.concatenate(dsts)])
    Ne = lig_e_index.shape[1]
    lig_graph = dict(
        h_type=(jnp.arange(Nl) % Kh).astype(jnp.int32),
        x=jax.random.normal(k_ligx, (Nl, 3), jnp.float32),
        e_index=lig_e_index,
        e_type=(jnp.arange(Ne) % Ke).astype(jnp.int32),
        batch=lig_batch,
    )

    # inter edges: each rec node connects to 2 ligand nodes of the same graph
    rec_per, lig_per = Nr // B, Nl // B
    isrc, idst = [], []
    for g in range(B):
        for r in range(rec_per):
            for off in range(2):
                isrc.append(g * rec_per + r)
                idst.append(g * lig_per + (r + off) % lig_per)
    inter_e_index = jnp.array([isrc, idst], dtype=jnp.int32)
    Ni = inter_e_index.shape[1]
    inter_e_type = (jnp.arange(Ni) % Ki).astype(jnp.int32)

    timestep = jnp.array([10, 60], dtype=jnp.int32)

    transitions = (
        DiscreteTransition(Kh, T),      # lig_h_transition
        ContinuousTransition(T),        # lig_x_transition
        DiscreteTransition(Ke, T),      # lig_e_transition
        DiscreteTransition(Ki, T),      # inter_e_transition
    )
    model = StandInModel(k_model, Dr, Kh, Ke, Ki, H, T)
    confs = dict(abl_igen=False, mse_train_objective='noise',
                 lig_h_loss=1.0, lig_x_loss=1.0, lig_e_loss=1.0,
                 inter_e_loss=1.0, active_rec_h_for_inter_e_loss=1.0)

    loss_mod = InterEDGEDirectLoss(confs, model, transitions)
    outs = loss_mod.forward(rec_graph, lig_graph, inter_e_index, inter_e_type,
                            timestep, k_run)
    jax.block_until_ready(outs)
    print("KERNEL_OK")
</pallas_src>

<mosaic_0001>
module attributes {stable_mosaic.version = 11 : i64} {
  func.func @_lig_node_kernel(%arg0: i32, %arg1: memref<8x1xi32, #tpu.memory_space<vmem>>, %arg2: memref<8x1xi32, #tpu.memory_space<vmem>>, %arg3: memref<8x1xf32, #tpu.memory_space<vmem>>, %arg4: memref<8x1xf32, #tpu.memory_space<vmem>>, %arg5: memref<8x1xf32, #tpu.memory_space<vmem>>, %arg6: memref<8x1xf32, #tpu.memory_space<vmem>>, %arg7: memref<8x3xf32, #tpu.memory_space<vmem>>, %arg8: memref<8x3xf32, #tpu.memory_space<vmem>>, %arg9: memref<8x32xf32, #tpu.memory_space<vmem>>, %arg10: memref<1x32xf32, #tpu.memory_space<vmem>>, %arg11: memref<1x32xf32, #tpu.memory_space<vmem>>, %arg12: memref<32x3xf32, #tpu.memory_space<vmem>>, %arg13: memref<3x3xf32, #tpu.memory_space<vmem>>, %arg14: memref<1x3xf32, #tpu.memory_space<vmem>>, %arg15: memref<32x8xf32, #tpu.memory_space<vmem>>, %arg16: memref<1x8xf32, #tpu.memory_space<vmem>>, %arg17: memref<1x1xf32, #tpu.memory_space<vmem>>, %arg18: memref<1x1xf32, #tpu.memory_space<vmem>>) attributes {dimension_semantics = [#tpu.dimension_semantics<arbitrary>], iteration_bounds = array<i64: 1>, scalar_prefetch = 0 : i64, scratch_operands = 0 : i64, tpu.core_type = #tpu.core_type<tc>, window_params = [{transform_indices = @transform_0, window_bounds = array<i64: 8, 1>}, {transform_indices = @transform_1, window_bounds = array<i64: 8, 1>}, {transform_indices = @transform_2, window_bounds = array<i64: 8, 1>}, {transform_indices = @transform_3, window_bounds = array<i64: 8, 1>}, {transform_indices = @transform_4, window_bounds = array<i64: 8, 1>}, {transform_indices = @transform_5, window_bounds = array<i64: 8, 1>}, {transform_indices = @transform_6, window_bounds = array<i64: 8, 3>}, {transform_indices = @transform_7, window_bounds = array<i64: 8, 3>}, {pipeline_mode = #tpu.pipeline_mode<synchronous>, transform_indices = @transform_8, window_bounds = array<i64: 8, 32>}, {pipeline_mode = #tpu.pipeline_mode<synchronous>, transform_indices = @transform_9, window_bounds = array<i64: 1, 32>}, {pipeline_mode = #tpu.pipeline_mode<synchronous>, transform_indices = @transform_10, window_bounds = array<i64: 1, 32>}, {pipeline_mode = #tpu.pipeline_mode<synchronous>, transform_indices = @transform_11, window_bounds = array<i64: 32, 3>}, {pipeline_mode = #tpu.pipeline_mode<synchronous>, transform_indices = @transform_12, window_bounds = array<i64: 3, 3>}, {pipeline_mode = #tpu.pipeline_mode<synchronous>, transform_indices = @transform_13, window_bounds = array<i64: 1, 3>}, {pipeline_mode = #tpu.pipeline_mode<synchronous>, transform_indices = @transform_14, window_bounds = array<i64: 32, 8>}, {pipeline_mode = #tpu.pipeline_mode<synchronous>, transform_indices = @transform_15, window_bounds = array<i64: 1, 8>}, {pipeline_mode = #tpu.pipeline_mode<synchronous>, transform_indices = @transform_16, window_bounds = array<i64: 1, 1>}, {pipeline_mode = #tpu.pipeline_mode<synchronous>, transform_indices = @transform_17, window_bounds = array<i64: 1, 1>}]} {
    %c0_i32 = arith.constant 0 : i32
    %0 = arith.cmpi eq, %arg0, %c0_i32 : i32
    %1 = arith.extui %0 : i1 to i32
    %c0_i32_0 = arith.constant 0 : i32
    %2 = arith.cmpi ne, %1, %c0_i32_0 : i32
    scf.if %2 {
      %cst_63 = arith.constant 0.000000e+00 : f32
      %137 = vector.broadcast %cst_63 : f32 to vector<1x1xf32>
      %c0_64 = arith.constant 0 : index
      %c0_65 = arith.constant 0 : index
      %138 = vector.load %arg17[%c0_64, %c0_65] : memref<1x1xf32, #tpu.memory_space<vmem>>, vector<1x1xf32>
      tpu.vector_store %arg17[%c0_64, %c0_65], %137 {strides = array<i32>} : memref<1x1xf32, #tpu.memory_space<vmem>>, vector<1x1xf32>,
      %cst_66 = arith.constant 0.000000e+00 : f32
      %139 = vector.broadcast %cst_66 : f32 to vector<1x1xf32>
      %c0_67 = arith.constant 0 : index
      %c0_68 = arith.constant 0 : index
      %140 = vector.load %arg18[%c0_67, %c0_68] : memref<1x1xf32, #tpu.memory_space<vmem>>, vector<1x1xf32>
      tpu.vector_store %arg18[%c0_67, %c0_68], %139 {strides = array<i32>} : memref<1x1xf32, #tpu.memory_space<vmem>>, vector<1x1xf32>,
    } else {
    }
    %3 = tpu.iota {dimensions = array<i32: 1>} : vector<8x8xi32>
    %c0 = arith.constant 0 : index
    %c0_1 = arith.constant 0 : index
    %4 = vector.load %arg1[%c0, %c0_1] : memref<8x1xi32, #tpu.memory_space<vmem>>, vector<8x1xi32>
    %5 = vector.broadcast %4 : vector<8x1xi32> to vector<8x8xi32>
    %6 = arith.cmpi eq, %3, %5 : vector<8x8xi32>
    %7 = arith.extui %6 : vector<8x8xi1> to vector<8x8xi32>
    %8 = arith.sitofp %7 : vector<8x8xi32> to vector<8x8xf32>
    %c0_2 = arith.constant 0 : index
    %c0_3 = arith.constant 0 : index
    %9 = vector.load %arg2[%c0_2, %c0_3] : memref<8x1xi32, #tpu.memory_space<vmem>>, vector<8x1xi32>
    %10 = vector.broadcast %9 : vector<8x1xi32> to vector<8x8xi32>
    %11 = arith.cmpi eq, %3, %10 : vector<8x8xi32>
    %12 = arith.extui %11 : vector<8x8xi1> to vector<8x8xi32>
    %13 = arith.sitofp %12 : vector<8x8xi32> to vector<8x8xf32>
    %c0_4 = arith.constant 0 : index
    %c0_5 = arith.constant 0 : index
    %14 = vector.load %arg6[%c0_4, %c0_5] : memref<8x1xf32, #tpu.memory_space<vmem>>, vector<8x1xf32>
    %c0_6 = arith.constant 0 : index
    %c0_7 = arith.constant 0 : index
    %15 = vector.load %arg9[%c0_6, %c0_7] : memref<8x32xf32, #tpu.memory_space<vmem>>, vector<8x32xf32>
    %16 = arith.truncf %8 : vector<8x8xf32> to vector<8x8xbf16>
    %17 = arith.truncf %15 : vector<8x32xf32> to vector<8x32xbf16>
    %cst = arith.constant dense<0.000000e+00> : vector<8x32xf32>
    %18 = tpu.matmul %16, %17, %cst {dimension_numbers = #tpu.dot_dimension_numbers<[1], [0], [0], [1], [0, 0, 1, 1], [], []>} : vector<8x8xbf16>, vector<8x32xbf16>, vector<8x32xf32> -> vector<8x32xf32>
    %c0_8 = arith.constant 0 : index
    %c0_9 = arith.constant 0 : index
    %19 = vector.load %arg3[%c0_8, %c0_9] : memref<8x1xf32, #tpu.memory_space<vmem>>, vector<8x1xf32>
    %c0_10 = arith.constant 0 : index
    %c0_11 = arith.constant 0 : index
    %20 = vector.load %arg10[%c0_10, %c0_11] : memref<1x32xf32, #tpu.memory_space<vmem>>, vector<1x32xf32>
    %21 = vector.broadcast %19 : vector<8x1xf32> to vector<8x32xf32>
    %22 = vector.broadcast %20 : vector<1x32xf32> to vector<8x32xf32>
    %23 = arith.mulf %21, %22 : vector<8x32xf32>
    %24 = arith.addf %18, %23 : vector<8x32xf32>
    %c0_12 = arith.constant 0 : index
    %c0_13 = arith.constant 0 : index
    %25 = vector.load %arg11[%c0_12, %c0_13] : memref<1x32xf32, #tpu.memory_space<vmem>>, vector<1x32xf32>
    %26 = vector.broadcast %25 : vector<1x32xf32> to vector<8x32xf32>
    %27 = arith.addf %24, %26 : vector<8x32xf32>
    %c0_14 = arith.constant 0 : index
    %c0_15 = arith.constant 0 : index
    %28 = vector.load %arg12[%c0_14, %c0_15] : memref<32x3xf32, #tpu.memory_space<vmem>>, vector<32x3xf32>
    %29 = arith.truncf %27 : vector<8x32xf32> to vector<8x32xbf16>
    %30 = arith.truncf %28 : vector<32x3xf32> to vector<32x3xbf16>
    %cst_16 = arith.constant dense<0.000000e+00> : vector<8x3xf32>
    %31 = tpu.matmul %29, %30, %cst_16 {dimension_numbers = #tpu.dot_dimension_numbers<[1], [0], [0], [1], [0, 0, 1, 1], [], []>} : vector<8x32xbf16>, vector<32x3xbf16>, vector<8x3xf32> -> vector<8x3xf32>
    %c0_17 = arith.constant 0 : index
    %c0_18 = arith.constant 0 : index
    %32 = vector.load %arg7[%c0_17, %c0_18] : memref<8x3xf32, #tpu.memory_space<vmem>>, vector<8x3xf32>
    %c0_19 = arith.constant 0 : index
    %c0_20 = arith.constant 0 : index
    %33 = vector.load %arg13[%c0_19, %c0_20] : memref<3x3xf32, #tpu.memory_space<vmem>>, vector<3x3xf32>
    %34 = arith.truncf %32 : vector<8x3xf32> to vector<8x3xbf16>
    %35 = arith.truncf %33 : vector<3x3xf32> to vector<3x3xbf16>
    %cst_21 = arith.constant dense<0.000000e+00> : vector<8x3xf32>
    %36 = tpu.matmul %34, %35, %cst_21 {dimension_numbers = #tpu.dot_dimension_numbers<[1], [0], [0], [1], [0, 0, 1, 1], [], []>} : vector<8x3xbf16>, vector<3x3xbf16>, vector<8x3xf32> -> vector<8x3xf32>
    %37 = arith.addf %31, %36 : vector<8x3xf32>
    %c0_22 = arith.constant 0 : index
    %c0_23 = arith.constant 0 : index
    %38 = vector.load %arg14[%c0_22, %c0_23] : memref<1x3xf32, #tpu.memory_space<vmem>>, vector<1x3xf32>
    %39 = vector.broadcast %38 : vector<1x3xf32> to vector<8x3xf32>
    %40 = arith.addf %37, %39 : vector<8x3xf32>
    %c0_24 = arith.constant 0 : index
    %c0_25 = arith.constant 0 : index
    %41 = vector.load %arg8[%c0_24, %c0_25] : memref<8x3xf32, #tpu.memory_space<vmem>>, vector<8x3xf32>
    %42 = arith.subf %40, %41 : vector<8x3xf32>
    %43 = vector.broadcast %14 : vector<8x1xf32> to vector<8x3xf32>
    %44 = arith.mulf %42, %43 : vector<8x3xf32>
    %c0_26 = arith.constant 0 : index
    %c0_27 = arith.constant 0 : index
    %45 = vector.load %arg18[%c0_26, %c0_27] : memref<1x1xf32, #tpu.memory_space<vmem>>, vector<1x1xf32>
    %46 = arith.mulf %44, %44 : vector<8x3xf32>
    %cst_28 = arith.constant dense<0.000000e+00> : vector<8xf32>
    %47 = vector.multi_reduction <add>, %46, %cst_28 [1] : vector<8x3xf32> to vector<8xf32>
    %48 = vector.shape_cast %47 : vector<8xf32> to vector<8x1xf32>
    %cst_29 = arith.constant dense<0.000000e+00> : vector<1xf32>
    %49 = vector.multi_reduction <add>, %48, %cst_29 [0] : vector<8x1xf32> to vector<1xf32>
    %50 = vector.shape_cast %49 : vector<1xf32> to vector<1x1xf32>
    %51 = arith.addf %45, %50 : vector<1x1xf32>
    %c0_30 = arith.constant 0 : index
    %c0_31 = arith.constant 0 : index
    %52 = vector.load %arg18[%c0_30, %c0_31] : memref<1x1xf32, #tpu.memory_space<vmem>>, vector<1x1xf32>
    tpu.vector_store %arg18[%c0_30, %c0_31], %51 {strides = array<i32>} : memref<1x1xf32, #tpu.memory_space<vmem>>, vector<1x1xf32>,
    %c0_32 = arith.constant 0 : index
    %c0_33 = arith.constant 0 : index
    %53 = vector.load %arg15[%c0_32, %c0_33] : memref<32x8xf32, #tpu.memory_space<vmem>>, vector<32x8xf32>
    %54 = arith.truncf %27 : vector<8x32xf32> to vector<8x32xbf16>
    %55 = arith.truncf %53 : vector<32x8xf32> to vector<32x8xbf16>
    %cst_34 = arith.constant dense<0.000000e+00> : vector<8x8xf32>
    %56 = tpu.matmul %54, %55, %cst_34 {dimension_numbers = #tpu.dot_dimension_numbers<[1], [0], [0], [1], [0, 0, 1, 1], [], []>} : vector<8x32xbf16>, vector<32x8xbf16>, vector<8x8xf32> -> vector<8x8xf32>
    %c0_35 = arith.constant 0 : index
    %c0_36 = arith.constant 0 : index
    %57 = vector.load %arg16[%c0_35, %c0_36] : memref<1x8xf32, #tpu.memory_space<vmem>>, vector<1x8xf32>
    %58 = vector.broadcast %57 : vector<1x8xf32> to vector<8x8xf32>
    %59 = arith.addf %56, %58 : vector<8x8xf32>
    %cst_37 = arith.constant dense<0xFF800000> : vector<8xf32>
    %60 = vector.multi_reduction <maximumf>, %59, %cst_37 [1] : vector<8x8xf32> to vector<8xf32>
    %61 = vector.shape_cast %60 : vector<8xf32> to vector<8x1xf32>
    %62 = vector.broadcast %61 : vector<8x1xf32> to vector<8x8xf32>
    %63 = arith.subf %59, %62 : vector<8x8xf32>
    %64 = math.exp %63 : vector<8x8xf32>
    %cst_38 = arith.constant dense<0.000000e+00> : vector<8xf32>
    %65 = vector.multi_reduction <add>, %64, %cst_38 [1] : vector<8x8xf32> to vector<8xf32>
    %66 = vector.shape_cast %65 : vector<8xf32> to vector<8x1xf32>
    %67 = tpu.reciprocal %66 {approx = true} : vector<8x1xf32> -> vector<8x1xf32>
    %68 = vector.broadcast %67 : vector<8x1xf32> to vector<8x8xf32>
    %69 = arith.mulf %64, %68 : vector<8x8xf32>
    %c0_39 = arith.constant 0 : index
    %c0_40 = arith.constant 0 : index
    %70 = vector.load %arg4[%c0_39, %c0_40] : memref<8x1xf32, #tpu.memory_space<vmem>>, vector<8x1xf32>
    %c0_41 = arith.constant 0 : index
    %c0_42 = arith.constant 0 : index
    %71 = vector.load %arg5[%c0_41, %c0_42] : memref<8x1xf32, #tpu.memory_space<vmem>>, vector<8x1xf32>
    %cst_43 = arith.constant 1.000000e-30 : f32
    %72 = vector.broadcast %cst_43 : f32 to vector<8x8xf32>
    %73 = arith.addf %13, %72 : vector<8x8xf32>
    %74 = vector.broadcast %70 : vector<8x1xf32> to vector<8x8xf32>
    %75 = arith.mulf %74, %8 : vector<8x8xf32>
    %cst_44 = arith.constant 1.000000e+00 : f32
    %76 = vector.broadcast %cst_44 : f32 to vector<8x1xf32>
    %77 = arith.subf %76, %70 : vector<8x1xf32>
    %cst_45 = arith.constant 8.000000e+00 : f32
    %78 = vector.broadcast %cst_45 : f32 to vector<8x1xf32>
    %79 = arith.divf %77, %78 : vector<8x1xf32>
    %80 = vector.broadcast %79 : vector<8x1xf32> to vector<8x8xf32>
    %81 = arith.addf %75, %80 : vector<8x8xf32>
    %82 = vector.broadcast %71 : vector<8x1xf32> to vector<8x8xf32>
    %83 = arith.mulf %82, %73 : vector<8x8xf32>
    %cst_46 = arith.constant 1.000000e+00 : f32
    %84 = vector.broadcast %cst_46 : f32 to vector<8x1xf32>
    %85 = arith.subf %84, %71 : vector<8x1xf32>
    %cst_47 = arith.constant 8.000000e+00 : f32
    %86 = vector.broadcast %cst_47 : f32 to vector<8x1xf32>
    %87 = arith.divf %85, %86 : vector<8x1xf32>
    %88 = vector.broadcast %87 : vector<8x1xf32> to vector<8x8xf32>
    %89 = arith.addf %83, %88 : vector<8x8xf32>
    %90 = arith.mulf %81, %89 : vector<8x8xf32>
    %cst_48 = arith.constant 1.000000e-30 : f32
    %91 = vector.broadcast %cst_48 : f32 to vector<8x8xf32>
    %92 = arith.addf %90, %91 : vector<8x8xf32>
    %93 = math.log %92 : vector<8x8xf32>
    %cst_49 = arith.constant dense<0.000000e+00> : vector<8xf32>
    %94 = vector.multi_reduction <add>, %90, %cst_49 [1] : vector<8x8xf32> to vector<8xf32>
    %95 = vector.shape_cast %94 : vector<8xf32> to vector<8x1xf32>
    %96 = math.log %95 : vector<8x1xf32>
    %97 = vector.broadcast %96 : vector<8x1xf32> to vector<8x8xf32>
    %98 = arith.subf %93, %97 : vector<8x8xf32>
    %99 = vector.broadcast %70 : vector<8x1xf32> to vector<8x8xf32>
    %100 = arith.mulf %99, %8 : vector<8x8xf32>
    %cst_50 = arith.constant 1.000000e+00 : f32
    %101 = vector.broadcast %cst_50 : f32 to vector<8x1xf32>
    %102 = arith.subf %101, %70 : vector<8x1xf32>
    %cst_51 = arith.constant 8.000000e+00 : f32
    %103 = vector.broadcast %cst_51 : f32 to vector<8x1xf32>
    %104 = arith.divf %102, %103 : vector<8x1xf32>
    %105 = vector.broadcast %104 : vector<8x1xf32> to vector<8x8xf32>
    %106 = arith.addf %100, %105 : vector<8x8xf32>
    %107 = vector.broadcast %71 : vector<8x1xf32> to vector<8x8xf32>
    %108 = arith.mulf %107, %69 : vector<8x8xf32>
    %cst_52 = arith.constant 1.000000e+00 : f32
    %109 = vector.broadcast %cst_52 : f32 to vector<8x1xf32>
    %110 = arith.subf %109, %71 : vector<8x1xf32>
    %cst_53 = arith.constant 8.000000e+00 : f32
    %111 = vector.broadcast %cst_53 : f32 to vector<8x1xf32>
    %112 = arith.divf %110, %111 : vector<8x1xf32>
    %113 = vector.broadcast %112 : vector<8x1xf32> to vector<8x8xf32>
    %114 = arith.addf %108, %113 : vector<8x8xf32>
    %115 = arith.mulf %106, %114 : vector<8x8xf32>
    %cst_54 = arith.constant 1.000000e-30 : f32
    %116 = vector.broadcast %cst_54 : f32 to vector<8x8xf32>
    %117 = arith.addf %115, %116 : vector<8x8xf32>
    %118 = math.log %117 : vector<8x8xf32>
    %cst_55 = arith.constant dense<0.000000e+00> : vector<8xf32>
    %119 = vector.multi_reduction <add>, %115, %cst_55 [1] : vector<8x8xf32> to vector<8xf32>
    %120 = vector.shape_cast %119 : vector<8xf32> to vector<8x1xf32>
    %121 = math.log %120 : vector<8x1xf32>
    %122 = vector.broadcast %121 : vector<8x1xf32> to vector<8x8xf32>
    %123 = arith.subf %118, %122 : vector<8x8xf32>
    %124 = math.exp %98 : vector<8x8xf32>
    %125 = arith.subf %98, %123 : vector<8x8xf32>
    %126 = arith.mulf %124, %125 : vector<8x8xf32>
    %cst_56 = arith.constant dense<0.000000e+00> : vector<8xf32>
    %127 = vector.multi_reduction <add>, %126, %cst_56 [1] : vector<8x8xf32> to vector<8xf32>
    %128 = vector.shape_cast %127 : vector<8xf32> to vector<8x1xf32>
    %c0_57 = arith.constant 0 : index
    %c0_58 = arith.constant 0 : index
    %129 = vector.load %arg17[%c0_57, %c0_58] : memref<1x1xf32, #tpu.memory_space<vmem>>, vector<1x1xf32>
    %130 = arith.mulf %128, %14 : vector<8x1xf32>
    %cst_59 = arith.constant dense<0.000000e+00> : vector<8xf32>
    %131 = vector.multi_reduction <add>, %130, %cst_59 [1] : vector<8x1xf32> to vector<8xf32>
    %132 = vector.shape_cast %131 : vector<8xf32> to vector<8x1xf32>
    %cst_60 = arith.constant dense<0.000000e+00> : vector<1xf32>
    %133 = vector.multi_reduction <add>, %132, %cst_60 [0] : vector<8x1xf32> to vector<1xf32>
    %134 = vector.shape_cast %133 : vector<1xf32> to vector<1x1xf32>
    %135 = arith.addf %129, %134 : vector<1x1xf32>
    %c0_61 = arith.constant 0 : index
    %c0_62 = arith.constant 0 : index
    %136 = vector.load %arg17[%c0_61, %c0_62] : memref<1x1xf32, #tpu.memory_space<vmem>>, vector<1x1xf32>
    tpu.vector_store %arg17[%c0_61, %c0_62], %135 {strides = array<i32>} : memref<1x1xf32, #tpu.memory_space<vmem>>, vector<1x1xf32>,
    return
  }
  func.func @transform_0(%arg0: i32) -> (i32, i32) {
    %c0_i32 = arith.constant 0 : i32
    %c0_i32_0 = arith.constant 0 : i32
    return %arg0, %c0_i32 : i32, i32
  }
  func.func @transform_1(%arg0: i32) -> (i32, i32) {
    %c0_i32 = arith.constant 0 : i32
    %c0_i32_0 = arith.constant 0 : i32
    return %arg0, %c0_i32 : i32, i32
  }
  func.func @transform_2(%arg0: i32) -> (i32, i32) {
    %c0_i32 = arith.constant 0 : i32
    %c0_i32_0 = arith.constant 0 : i32
    return %arg0, %c0_i32 : i32, i32
  }
  func.func @transform_3(%arg0: i32) -> (i32, i32) {
    %c0_i32 = arith.constant 0 : i32
    %c0_i32_0 = arith.constant 0 : i32
    return %arg0, %c0_i32 : i32, i32
  }
  func.func @transform_4(%arg0: i32) -> (i32, i32) {
    %c0_i32 = arith.constant 0 : i32
    %c0_i32_0 = arith.constant 0 : i32
    return %arg0, %c0_i32 : i32, i32
  }
  func.func @transform_5(%arg0: i32) -> (i32, i32) {
    %c0_i32 = arith.constant 0 : i32
    %c0_i32_0 = arith.constant 0 : i32
    return %arg0, %c0_i32 : i32, i32
  }
  func.func @transform_6(%arg0: i32) -> (i32, i32) {
    %c0_i32 = arith.constant 0 : i32
    %c0_i32_0 = arith.constant 0 : i32
    return %arg0, %c0_i32 : i32, i32
  }
  func.func @transform_7(%arg0: i32) -> (i32, i32) {
    %c0_i32 = arith.constant 0 : i32
    %c0_i32_0 = arith.constant 0 : i32
    return %arg0, %c0_i32 : i32, i32
  }
  func.func @transform_8(%arg0: i32) -> (i32, i32) {
    %c0_i32 = arith.constant 0 : i32
    %c0_i32_0 = arith.constant 0 : i32
    %c0_i32_1 = arith.constant 0 : i32
    return %c0_i32, %c0_i32_0 : i32, i32
  }
  func.func @transform_9(%arg0: i32) -> (i32, i32) {
    %c0_i32 = arith.constant 0 : i32
    %c0_i32_0 = arith.constant 0 : i32
    %c0_i32_1 = arith.constant 0 : i32
    return %c0_i32, %c0_i32_0 : i32, i32
  }
  func.func @transform_10(%arg0: i32) -> (i32, i32) {
    %c0_i32 = arith.constant 0 : i32
    %c0_i32_0 = arith.constant 0 : i32
    %c0_i32_1 = arith.constant 0 : i32
    return %c0_i32, %c0_i32_0 : i32, i32
  }
  func.func @transform_11(%arg0: i32) -> (i32, i32) {
    %c0_i32 = arith.constant 0 : i32
    %c0_i32_0 = arith.constant 0 : i32
    %c0_i32_1 = arith.constant 0 : i32
    return %c0_i32, %c0_i32_0 : i32, i32
  }
  func.func @transform_12(%arg0: i32) -> (i32, i32) {
    %c0_i32 = arith.constant 0 : i32
    %c0_i32_0 = arith.constant 0 : i32
    %c0_i32_1 = arith.constant 0 : i32
    return %c0_i32, %c0_i32_0 : i32, i32
  }
  func.func @transform_13(%arg0: i32) -> (i32, i32) {
    %c0_i32 = arith.constant 0 : i32
    %c0_i32_0 = arith.constant 0 : i32
    %c0_i32_1 = arith.constant 0 : i32
    return %c0_i32, %c0_i32_0 : i32, i32
  }
  func.func @transform_14(%arg0: i32) -> (i32, i32) {
    %c0_i32 = arith.constant 0 : i32
    %c0_i32_0 = arith.constant 0 : i32
    %c0_i32_1 = arith.constant 0 : i32
    return %c0_i32, %c0_i32_0 : i32, i32
  }
  func.func @transform_15(%arg0: i32) -> (i32, i32) {
    %c0_i32 = arith.constant 0 : i32
    %c0_i32_0 = arith.constant 0 : i32
    %c0_i32_1 = arith.constant 0 : i32
    return %c0_i32, %c0_i32_0 : i32, i32
  }
  func.func @transform_16(%arg0: i32) -> (i32, i32) {
    %c0_i32 = arith.constant 0 : i32
    %c0_i32_0 = arith.constant 0 : i32
    %c0_i32_1 = arith.constant 0 : i32
    return %c0_i32, %c0_i32_0 : i32, i32
  }
  func.func @transform_17(%arg0: i32) -> (i32, i32) {
    %c0_i32 = arith.constant 0 : i32
    %c0_i32_0 = arith.constant 0 : i32
    %c0_i32_1 = arith.constant 0 : i32
    return %c0_i32, %c0_i32_0 : i32, i32
  }
}

</mosaic_0001>

<llo_original>
// kernel: tpu_custom_call.1
$region0: #{tpu_custom_call.1}
  #allocation0 [shape = 'u32[]', space=smem, size = 0x4, offset = 0x4, fixed_abs, tag = 'smem constant byte address 0x4 - core index']
  #allocation1 [shape = 'u32[72,128]{1,0:T(1,128)}', space=vmem, size = 0x9000, scoped, tag = 'internal scratch']
  %s0 = inlined_call_operand.vmem [shape: s32[8,1], index: 0, kind: input, shape index: {}]
  %s1 = inlined_call_operand.vmem [shape: s32[8,1], index: 1, kind: input, shape index: {}]
  %s2 = inlined_call_operand.vmem [shape: f32[8,1], index: 2, kind: input, shape index: {}]
  %s3 = inlined_call_operand.vmem [shape: f32[8,1], index: 3, kind: input, shape index: {}]
  %s4 = inlined_call_operand.vmem [shape: f32[8,1], index: 4, kind: input, shape index: {}]
  %s5 = inlined_call_operand.vmem [shape: f32[8,1], index: 5, kind: input, shape index: {}]
  %s6 = inlined_call_operand.vmem [shape: f32[8,3], index: 6, kind: input, shape index: {}]
  %s7 = inlined_call_operand.vmem [shape: f32[8,3], index: 7, kind: input, shape index: {}]
  %s8 = inlined_call_operand.vmem [shape: f32[8,32], index: 8, kind: input, shape index: {}]
  %s9 = inlined_call_operand.vmem [shape: f32[1,32], index: 9, kind: input, shape index: {}]
  %s10 = inlined_call_operand.vmem [shape: f32[1,32], index: 10, kind: input, shape index: {}]
  %s11 = inlined_call_operand.vmem [shape: f32[32,3], index: 11, kind: input, shape index: {}]
  %s12 = inlined_call_operand.vmem [shape: f32[3,3], index: 12, kind: input, shape index: {}]
  %s13 = inlined_call_operand.vmem [shape: f32[1,3], index: 13, kind: input, shape index: {}]
  %s14 = inlined_call_operand.vmem [shape: f32[32,8], index: 14, kind: input, shape index: {}]
  %s15 = inlined_call_operand.vmem [shape: f32[1,8], index: 15, kind: input, shape index: {}]
  %s16 = inlined_call_operand.hbm [shape: f32[1,1], index: 16, kind: output, shape index: {0}]
  %s17 = inlined_call_operand.hbm [shape: f32[1,1], index: 17, kind: output, shape index: {1}]
  %18 = xla_tuple %s16, %s17
  %s19 = sld [smem:[#allocation0]]
  $region86: #{tpu_custom_call.1} parent=0
    _
  %s21 = ssub.s32 1, %s19
  %s22 = scalar_select 0, %s21, %s19
  $region1: #{tpu_custom_call.1} parent=0
    #allocation2 [shape = 'u8[512]{0}', space=vmem, size = 0x400, scoped, tag = 'output window, operand 0, single buffered']
    #allocation3 [shape = 's32[1]{0}', space=sflag, size = 0x4, scoped, tag = 'scoped memory for tpu_custom_call.1']
    #allocation4 [shape = 'u8[512]{0}', space=vmem, size = 0x400, scoped, tag = 'output window, operand 1, single buffered']
    #allocation5 [shape = 's32[1]{0}', space=sflag, size = 0x4, scoped, tag = 'scoped memory for tpu_custom_call.1']
    %23 = vsyncpa [#allocation3], 0
    %24 = vsyncpa [#allocation5], 0
    // Predicated region
    $region2: #{tpu_custom_call.1} parent=1 // pred_check
      _
    $region3: #{tpu_custom_call.1} parent=1 // pred_check_branch
      %26 = sbr.rel (0) target = $region5
    $region4: #{tpu_custom_call.1} parent=1 // pred_region
      _
    $region5: #{tpu_custom_call.1} parent=1 // pred_fallthru
      _
    // Predicated region
    $region6: #{tpu_custom_call.1} parent=1 // pred_check
      _
    $region7: #{tpu_custom_call.1} parent=1 // pred_check_branch
      %28 = sbr.rel (0) target = $region9
    $region8: #{tpu_custom_call.1} parent=1 // pred_region
      _
    $region9: #{tpu_custom_call.1} parent=1 // pred_fallthru
      _
    // Predicated region
    $region10: #{tpu_custom_call.1} parent=1 // pred_check
      _
    $region11: #{tpu_custom_call.1} parent=1 // pred_check_branch
      %30 = sbr.rel (0) target = $region13
    $region12: #{tpu_custom_call.1} parent=1 // pred_region
      _
    $region13: #{tpu_custom_call.1} parent=1 // pred_fallthru
      _
    // Predicated region
    $region14: #{tpu_custom_call.1} parent=1 // pred_check
      _
    $region15: #{tpu_custom_call.1} parent=1 // pred_check_branch
      %32 = sbr.rel (0) target = $region17
    $region16: #{tpu_custom_call.1} parent=1 // pred_region
      _
    $region17: #{tpu_custom_call.1} parent=1 // pred_fallthru
      _
    // Predicated region
    $region18: #{tpu_custom_call.1} parent=1 // pred_check
      _
    $region19: #{tpu_custom_call.1} parent=1 // pred_check_branch
      %34 = sbr.rel (0) target = $region21
    $region20: #{tpu_custom_call.1} parent=1 // pred_region
      _
    $region21: #{tpu_custom_call.1} parent=1 // pred_fallthru
      _
    // Predicated region
    $region22: #{tpu_custom_call.1} parent=1 // pred_check
      _
    $region23: #{tpu_custom_call.1} parent=1 // pred_check_branch
      %36 = sbr.rel (0) target = $region25
    $region24: #{tpu_custom_call.1} parent=1 // pred_region
      _
    $region25: #{tpu_custom_call.1} parent=1 // pred_fallthru
      _
    // Predicated region
    $region26: #{tpu_custom_call.1} parent=1 // pred_check
      _
    $region27: #{tpu_custom_call.1} parent=1 // pred_check_branch
      %38 = sbr.rel (0) target = $region29
    $region28: #{tpu_custom_call.1} parent=1 // pred_region
      _
    $region29: #{tpu_custom_call.1} parent=1 // pred_fallthru
      _
    // Predicated region
    $region30: #{tpu_custom_call.1} parent=1 // pred_check
      _
    $region31: #{tpu_custom_call.1} parent=1 // pred_check_branch
      %40 = sbr.rel (0) target = $region33
    $region32: #{tpu_custom_call.1} parent=1 // pred_region
      _
    $region33: #{tpu_custom_call.1} parent=1 // pred_fallthru
      _
    // Predicated region
    $region34: #{tpu_custom_call.1} parent=1 // pred_check
      _
    $region35: #{tpu_custom_call.1} parent=1 // pred_check_branch
      %42 = sbr.rel (0) target = $region37
    $region36: #{tpu_custom_call.1} parent=1 // pred_region
      _
    $region37: #{tpu_custom_call.1} parent=1 // pred_fallthru
      _
    // Predicated region
    $region38: #{tpu_custom_call.1} parent=1 // pred_check
      _
    $region39: #{tpu_custom_call.1} parent=1 // pred_check_branch
      %44 = sbr.rel (0) target = $region41
    $region40: #{tpu_custom_call.1} parent=1 // pred_region
      _
    $region41: #{tpu_custom_call.1} parent=1 // pred_fallthru
      _
    // Predicated region
    $region42: #{tpu_custom_call.1} parent=1 // pred_check
      _
    $region43: #{tpu_custom_call.1} parent=1 // pred_check_branch
      %46 = sbr.rel (0) target = $region45
    $region44: #{tpu_custom_call.1} parent=1 // pred_region
      _
    $region45: #{tpu_custom_call.1} parent=1 // pred_fallthru
      _
    // Predicated region
    $region46: #{tpu_custom_call.1} parent=1 // pred_check
      _
    $region47: #{tpu_custom_call.1} parent=1 // pred_check_branch
      %48 = sbr.rel (0) target = $region49
    $region48: #{tpu_custom_call.1} parent=1 // pred_region
      _
    $region49: #{tpu_custom_call.1} parent=1 // pred_fallthru
      _
    // Predicated region
    $region50: #{tpu_custom_call.1} parent=1 // pred_check
      _
    $region51: #{tpu_custom_call.1} parent=1 // pred_check_branch
      %50 = sbr.rel (0) target = $region53
    $region52: #{tpu_custom_call.1} parent=1 // pred_region
      _
    $region53: #{tpu_custom_call.1} parent=1 // pred_fallthru
      _
    // Predicated region
    $region54: #{tpu_custom_call.1} parent=1 // pred_check
      _
    $region55: #{tpu_custom_call.1} parent=1 // pred_check_branch
      %52 = sbr.rel (0) target = $region57
    $region56: #{tpu_custom_call.1} parent=1 // pred_region
      _
    $region57: #{tpu_custom_call.1} parent=1 // pred_fallthru
      _
    // Predicated region
    $region58: #{tpu_custom_call.1} parent=1 // pred_check
      _
    $region59: #{tpu_custom_call.1} parent=1 // pred_check_branch
      %54 = sbr.rel (0) target = $region61
    $region60: #{tpu_custom_call.1} parent=1 // pred_region
      _
    $region61: #{tpu_custom_call.1} parent=1 // pred_fallthru
      _
    // Predicated region
    $region62: #{tpu_custom_call.1} parent=1 // pred_check
      _
    $region63: #{tpu_custom_call.1} parent=1 // pred_check_branch
      %56 = sbr.rel (0) target = $region65
    $region64: #{tpu_custom_call.1} parent=1 // pred_region
      _
    $region65: #{tpu_custom_call.1} parent=1 // pred_fallthru
      _
    %p58 = scmp.eq.s32.totalorder 0, 0
    // Predicated region
    $region66: #{tpu_custom_call.1} parent=1 // pred_check
      %p59 = pneg %p58
    $region67: #{tpu_custom_call.1} parent=1 // pred_check_branch
      %61 = sbr.rel (%p59) target = $region69
    $region68: #{tpu_custom_call.1} parent=1 // pred_region
      %vm62 = vcmask 0
      %63 = vst.msk [vmem:[#allocation2] sm:$0x1] %vm62, 0.0
      %64 = vst.msk [vmem:[#allocation4] sm:$0x1] %vm62, 0.0
    $region69: #{tpu_custom_call.1} parent=1 // pred_fallthru
      _
    %v65 = vlaneseq
    %v66 = vand.u32 %v65, 127
    %v67 = vld [vmem:[%s0] sm:$0xff]
    %68 = vset.pattern.permute.xlu0 0
    %69 = vperm.xlu0 %68, %v67
    %v70 = vpop.permute.xlu0 %69
    %vm71 = vcmp.eq.s32.totalorder %v66, %v70
    %v72 = vsel %vm71, 1, 0
    %v73 = vcvt.s32.f32 %v72
    %v74 = vld [vmem:[%s1] sm:$0xff]
    %75 = vset.pattern.permute.xlu0 0
    %76 = vperm.xlu0 %75, %v74
    %v77 = vpop.permute.xlu0 %76
    %vm78 = vcmp.eq.s32.totalorder %v66, %v77
    %v79 = vsel %vm78, 1, 0
    %v80 = vcvt.s32.f32 %v79
    %v81 = vld [vmem:[%s5] sm:$0xff]
    %v82 = vld [vmem:[%s8] sm:$0xff]
    %v83 = vpack.c.bf16 %v73, %v73
    %v84 = vpack.c.bf16 %v82, %v82
    %v85 = vld [vmem:[%s2] sm:$0xff]
    %v86 = vld [vmem:[%s9] sm:$0x1]
    %88 = vset.pattern.permute.xlu0 0
    %89 = vperm.xlu0 %88, %v85
    %v90 = vpop.permute.xlu0 %89
    %v93 = vperm.slane %v86, 0
    %v95 = vmul.f32 %v90, %v93
    %vm96 = vcmask 64512
    %v98 = vsel %vm96, %v83, 0
    %vm100 = vcmask 1043456
    %v102 = vsel %vm100, %v84, 0
    %104 = vmatpush.bf16.msra.mxu0 0
    %105 = vmatpush.bf16.msra.mxu0 0
    %106 = vmatpush.bf16.msra.mxu0 0
    %107 = vmatpush.bf16.msra.mxu0 0
    %108 = vmatpush.bf16.msra.mxu0 0
    %109 = vmatpush.bf16.msra.mxu0 0
    %110 = vmatpush.bf16.msra.mxu0 0
    %111 = vmatpush.bf16.msra.mxu0 %v102
    %112 = vmatmul.bf16.gmra.mxu0 %v98
    %v113 = vpop.f32.mrf.mxu0
    %v114 = vadd.f32 %v95, %v113
    %v115 = vpop.f32.mrf.mxu0
    %116 = vdwg.mxu0
    %v117 = vld [vmem:[%s10] sm:$0x1]
    %v119 = vperm.slane %v117, 0
    %v121 = vadd.f32 %v114, %v119
    %v122 = vld [vmem:[%s11] sm:$0xff]
    %v123 = vld [vmem:[%s11 + $0x8] sm:$0xff]
    %v124 = vld [vmem:[%s11 + $0x10] sm:$0xff]
    %v125 = vld [vmem:[%s11 + $0x18] sm:$0xff]
    %v126 = vpack.c.bf16 %v121, %v121
    %v127 = vpack.c.bf16 %v123, %v122
    %v128 = vpack.c.bf16 %v125, %v124
    %v129 = vld [vmem:[%s6] sm:$0xff]
    %v130 = vld [vmem:[%s12] sm:$0x7]
    %v131 = vpack.c.bf16 %v129, %v129
    %v132 = vpack.c.bf16 %v130, %v130
    %vm133 = vcmask 23552
    %v135 = vsel %vm133, %v131, 0
    %vm137 = vcmask 1040384
    %vm138 = vcmask 1041408
    %v139 = vsel %vm137, 4294967295, 65535
    %v140 = vsel %vm138, %v139, 0
    %v142 = vand.u32 %v132, %v140
    %144 = vmatpush.bf16.msra.mxu0 0
    %145 = vmatpush.bf16.msra.mxu0 0
    %146 = vmatpush.bf16.msra.mxu0 0
    %147 = vmatpush.bf16.msra.mxu0 0
    %148 = vmatpush.bf16.msra.mxu0 0
    %149 = vmatpush.bf16.msra.mxu0 0
    %150 = vmatpush.bf16.msra.mxu0 0
    %151 = vmatpush.bf16.msra.mxu0 %v142
    %152 = vmatmul.bf16.gmra.mxu0 %v135
    %v153 = vpop.f32.mrf.mxu0
    %v154 = vadd.f32 0.0, %v153
    %v155 = vpop.f32.mrf.mxu0
    %156 = vdwg.mxu0
    %vm157 = vcmask 261120
    %v159 = vsel %vm157, %v126, 0
    %161 = vmatpush.bf16.msra.mxu0 0
    %162 = vmatpush.bf16.msra.mxu0 0
    %163 = vmatpush.bf16.msra.mxu0 0
    %164 = vmatpush.bf16.msra.mxu0 0
    %165 = vmatpush.bf16.msra.mxu0 0
    %166 = vmatpush.bf16.msra.mxu0 0
    %167 = vmatpush.bf16.msra.mxu0 %v128
    %168 = vmatpush.bf16.msra.mxu0 %v127
    %169 = vmatmul.bf16.gmra.mxu0 %v159
    %v170 = vpop.f32.mrf.mxu0
    %v171 = vadd.f32 %v154, %v170
    %v172 = vpop.f32.mrf.mxu0
    %173 = vdwg.mxu0
    %v174 = vld [vmem:[%s13] sm:$0x1]
    %v176 = vperm.slane %v174, 0
    %v178 = vadd.f32 %v171, %v176
    %v179 = vld [vmem:[%s7] sm:$0xff]
    %v180 = vsub.f32 %v178, %v179
    %182 = vset.pattern.permute.xlu0 0
    %183 = vperm.xlu0 %182, %v81
    %v184 = vpop.permute.xlu0 %183
    %v186 = vmul.f32 %v180, %v184
    %v187 = vld [vmem:[#allocation4] sm:$0x1]
    %v188 = vmul.f32 %v186, %v186
    %v189 = vsel %vm133, %v188, 0.0
    %190 = vadd.xlane.f32.xlu0 %v189
    %v191 = vpop.xlane.xlu0 %190
    %v192 = vrot.slane %v191, 4
    %v193 = vadd.f32 %v191, %v192
    %v194 = vrot.slane %v193, 2
    %v195 = vadd.f32 %v193, %v194
    %v196 = vrot.slane %v195, 1
    %v197 = vadd.f32 %v195, %v196
    %v198 = vadd.f32 %v187, %v197
    %vm199 = vcmask 0
    %200 = vst.msk [vmem:[#allocation4] sm:$0x1] %vm199, %v198
    %v201 = vld [vmem:[%s14] sm:$0xff]
    %v202 = vld [vmem:[%s14 + $0x8] sm:$0xff]
    %v203 = vld [vmem:[%s14 + $0x10] sm:$0xff]
    %v204 = vld [vmem:[%s14 + $0x18] sm:$0xff]
    %v205 = vpack.c.bf16 %v202, %v201
    %v206 = vpack.c.bf16 %v204, %v203
    %v207 = vld [vmem:[%s15] sm:$0x1]
    %v209 = vperm.slane %v207, 0
    %211 = vmatpush.bf16.msra.mxu0 0
    %212 = vmatpush.bf16.msra.mxu0 0
    %213 = vmatpush.bf16.msra.mxu0 0
    %214 = vmatpush.bf16.msra.mxu0 0
    %215 = vmatpush.bf16.msra.mxu0 0
    %216 = vmatpush.bf16.msra.mxu0 0
    %217 = vmatpush.bf16.msra.mxu0 %v206
    %218 = vmatpush.bf16.msra.mxu0 %v205
    %219 = vmatmul.bf16.gmra.mxu0 %v159
    %v220 = vpop.f32.mrf.mxu0
    %v221 = vadd.f32 %v209, %v220
    %v222 = vpop.f32.mrf.mxu0
    %223 = vdwg.mxu0
    %v224 = vsel %vm96, %v221, -inf
    %225 = vmax.xlane.f32.xlu0 %v224
    %v226 = vpop.xlane.xlu0 %225
    %v227 = vsub.f32 %v221, %v226
    %v228 = vmul.f32 %v227, 1.442695
    %v229 = vpow.pop %v228
    %v230 = vsel %vm96, %v229, 0.0
    %231 = vadd.xlane.f32.xlu0 %v230
    %v232 = vpop.xlane.xlu0 %231
    %v233 = vrcp.pop %v232
    %v234 = vmul.f32 %v229, %v233
    %v235 = vld [vmem:[%s3] sm:$0xff]
    %v236 = vld [vmem:[%s4] sm:$0xff]
    %v237 = vadd.f32 %v80, 1e-30
    %239 = vset.pattern.permute.xlu0 0
    %240 = vperm.xlu0 %239, %v235
    %v241 = vpop.permute.xlu0 %240
    %v243 = vmul.f32 %v241, %v73
    %v244 = vsub.f32 1.0, %v235
    %v245 = vrcp.pop 8.0
    %v246 = vmul.f32 8.0, %v245
    %v247 = vsub.f32 1.0, %v246
    %v248 = vmul.f32 %v245, %v247
    %v249 = vadd.f32 %v245, %v248
    %vm250 = vweird.f32 %v245
    %v251 = vsel %vm250, %v245, %v249
    %v252 = vmul.f32 %v244, %v251
    %254 = vset.pattern.permute.xlu0 0
    %255 = vperm.xlu0 %254, %v252
    %v256 = vpop.permute.xlu0 %255
    %v258 = vadd.f32 %v243, %v256
    %260 = vset.pattern.permute.xlu0 0
    %261 = vperm.xlu0 %260, %v236
    %v262 = vpop.permute.xlu0 %261
    %v264 = vmul.f32 %v262, %v237
    %v265 = vsub.f32 1.0, %v236
    %v266 = vmul.f32 %v265, %v251
    %268 = vset.pattern.permute.xlu0 0
    %269 = vperm.xlu0 %268, %v266
    %v270 = vpop.permute.xlu0 %269
    %v272 = vadd.f32 %v264, %v270
    %v273 = vmul.f32 %v258, %v272
    %v274 = vadd.f32 %v273, 1e-30
    %v275 = vlog2.pop %v274
    %v276 = vmul.f32 %v275, 0.6931472
    %v277 = vsel %vm96, %v273, 0.0
    %278 = vadd.xlane.f32.xlu0 %v277
    %v279 = vpop.xlane.xlu0 %278
    %v280 = vlog2.pop %v279
    %v281 = vmul.f32 %v280, 0.6931472
    %v282 = vsub.f32 %v276, %v281
    %v283 = vmul.f32 %v262, %v234
    %v284 = vadd.f32 %v283, %v270
    %v285 = vmul.f32 %v258, %v284
    %v286 = vadd.f32 %v285, 1e-30
    %v287 = vlog2.pop %v286
    %v288 = vmul.f32 %v287, 0.6931472
    %v289 = vsel %vm96, %v285, 0.0
    %290 = vadd.xlane.f32.xlu0 %v289
    %v291 = vpop.xlane.xlu0 %290
    %v292 = vlog2.pop %v291
    %v293 = vmul.f32 %v292, 0.6931472
    %v294 = vsub.f32 %v288, %v293
    %v295 = vmul.f32 %v282, 1.442695
    %v296 = vpow.pop %v295
    %v297 = vsub.f32 %v282, %v294
    %v298 = vmul.f32 %v296, %v297
    %v299 = vsel %vm96, %v298, 0.0
    %300 = vadd.xlane.f32.xlu0 %v299
    %v301 = vpop.xlane.xlu0 %300
    %v302 = vld [vmem:[#allocation2] sm:$0x1]
    %v303 = vmul.f32 %v301, %v81
    %v304 = vadd.f32 %v303, 0.0
    %vm305 = vcmask 7168
    %v306 = vsel %vm305, %v304, 0.0
    %v307 = vrot.slane %v306, 4
    %v308 = vadd.f32 %v306, %v307
    %v309 = vrot.slane %v308, 2
    %v310 = vadd.f32 %v308, %v309
    %v311 = vrot.slane %v310, 1
    %v312 = vadd.f32 %v310, %v311
    %v313 = vadd.f32 %v302, %v312
    %314 = vst.msk [vmem:[#allocation2] sm:$0x1] %vm199, %v313
    // Predicated region
    $region70: #{tpu_custom_call.1} parent=1 // pred_check
      _
    $region71: #{tpu_custom_call.1} parent=1 // pred_check_branch
      %316 = sbr.rel (0) target = $region73
    $region72: #{tpu_custom_call.1} parent=1 // pred_region
      %318 = vsyncadd [#allocation3], 0
      %s320 = sshll.u32 [#allocation2], 4
      %s321 = int_to_ptr.vmem [resolvable:$true] %s320
      %s322 = sshll.u32 %s16, 4
      %s323 = int_to_ptr.hbm [resolvable:$true] %s322
      %325 = dma.vmem_to_hbm [thread:$0]  %s321, 16, %s323, [#allocation3]
    $region73: #{tpu_custom_call.1} parent=1 // pred_fallthru
      _
    // Predicated region
    $region74: #{tpu_custom_call.1} parent=1 // pred_check
      _
    $region75: #{tpu_custom_call.1} parent=1 // pred_check_branch
      %327 = sbr.rel (0) target = $region77
    $region76: #{tpu_custom_call.1} parent=1 // pred_region
      %329 = vsyncadd [#allocation5], 0
      %s331 = sshll.u32 [#allocation4], 4
      %s332 = int_to_ptr.vmem [resolvable:$true] %s331
      %s333 = sshll.u32 %s17, 4
      %s334 = int_to_ptr.hbm [resolvable:$true] %s333
      %336 = dma.vmem_to_hbm [thread:$0]  %s332, 16, %s334, [#allocation5]
    $region77: #{tpu_custom_call.1} parent=1 // pred_fallthru
      _
    // Predicated region
    $region78: #{tpu_custom_call.1} parent=1 // pred_check
      _
    $region79: #{tpu_custom_call.1} parent=1 // pred_check_branch
      %338 = sbr.rel (0) target = $region81
    $region80: #{tpu_custom_call.1} parent=1 // pred_region
      %340 = dma.done [#allocation3], 16
    $region81: #{tpu_custom_call.1} parent=1 // pred_fallthru
      _
    // Predicated region
    $region82: #{tpu_custom_call.1} parent=1 // pred_check
      _
    $region83: #{tpu_custom_call.1} parent=1 // pred_check_branch
      %342 = sbr.rel (0) target = $region85
    $region84: #{tpu_custom_call.1} parent=1 // pred_region
      %344 = dma.done [#allocation5], 16
    $region85: #{tpu_custom_call.1} parent=1 // pred_fallthru
      _
    %345 = vsyncpa [#allocation3], 1
    %346 = vsyncpa [#allocation5], 1

</llo_original>
